<compile_context>
chip_gen: v5e
topology: v5e:2x2
jax: 0.10.0
libtpu: 0.0.40
codegen_flags: <defaults>
</compile_context>

<pallas_src>
import jax
import jax.numpy as jnp
from jax.experimental import pallas as pl
from jax.experimental.pallas import tpu as pltpu


def _bounded_relu_tresh_kernel(tresh_ref, x_ref, b_ref, o_ref):
    # tresh_ref: (1, 1) scalar in SMEM
    # x_ref:     (TILE_R, L) activation tile in VMEM
    # b_ref:     (TILE_R, 1) per-row bound in VMEM (broadcasts over lanes)
    t = tresh_ref[0, 0]
    x = x_ref[...]
    b = b_ref[...]
    clipped = jnp.where(x > b, t, x)                            # over-bound -> tresh
    o_ref[...] = jnp.maximum(clipped, jnp.zeros_like(clipped))  # final ReLU clamp


def _choose_tile_r(R, L, itemsize, target_bytes=1 << 20):
    """Row tile so each (TILE_R, L) block is ~1 MiB and sublane-aligned (mult of 8)."""
    if R <= 8:
        return R  # full extent — always a legal block dim
    tile = target_bytes // max(1, L * itemsize)
    tile = max(8, (min(tile, R) // 8) * 8)  # multiple of 8 sublanes
    return min(tile, R)


def bounded_relu_tresh(x, bounds, tresh):
    """x: (N, C, H, W); bounds: (C,); tresh: scalar. Returns same shape/dtype as x."""
    N, C, H, W = x.shape
    R, L = N * C, H * W
    # NOTE: H*W here is a multiple of 128 (lane-dense, unmasked stores). If production
    # spatial sizes give H*W % 128 != 0, re-flatten to a lane-dense slab (expanding
    # bounds per tile) rather than letting the output block be lane-sparse.

    x2d = x.reshape(R, L)
    # per-channel bound -> one value per (n, c) row
    b2d = jnp.broadcast_to(bounds.reshape(1, C), (N, C)).reshape(R, 1).astype(x.dtype)
    t2d = jnp.asarray(tresh, dtype=x.dtype).reshape(1, 1)

    tile_r = _choose_tile_r(R, L, x.dtype.itemsize)
    grid = (pl.cdiv(R, tile_r),)

    out2d = pl.pallas_call(
        _bounded_relu_tresh_kernel,
        out_shape=jax.ShapeDtypeStruct((R, L), x.dtype),
        grid=grid,
        in_specs=[
            pl.BlockSpec(memory_space=pltpu.MemorySpace.SMEM),  # tresh scalar, untiled
            pl.BlockSpec((tile_r, L), lambda i: (i, 0)),        # activation row tile
            pl.BlockSpec((tile_r, 1), lambda i: (i, 0)),        # per-row bound column
        ],
        out_specs=pl.BlockSpec((tile_r, L), lambda i: (i, 0)),
        compiler_params=pltpu.CompilerParams(
            dimension_semantics=("parallel",),  # shards tiles across both TCs on v7x
        ),
    )(t2d, x2d, b2d)

    return out2d.reshape(N, C, H, W)


if __name__ == "__main__":
    key = jax.random.PRNGKey(0)
    kx, kb = jax.random.split(key)

    N, C, H, W = 2, 4, 16, 16
    x = jax.random.normal(kx, (N, C, H, W), dtype=jnp.float32)

    # deterministic "parameters" (module stores bounds/tresh as nn.Parameters)
    bounds = 0.5 + 0.1 * jnp.arange(C, dtype=jnp.float32)   # per-channel bound
    tresh = jnp.float32(0.25)                               # scalar threshold

    out = bounded_relu_tresh(x, bounds, tresh)
    out = jax.block_until_ready(out)

    # pure-JAX reference check
    ref = jnp.maximum(
        jnp.where(x > bounds.reshape(1, C, 1, 1), tresh, x), 0.0
    )
    assert out.shape == x.shape and out.dtype == x.dtype
    assert jnp.allclose(out, ref), "mismatch vs reference"

    print("KERNEL_OK")
</pallas_src>

<mosaic_0001>
module attributes {stable_mosaic.version = 11 : i64} {
  func.func @_bounded_relu_tresh_kernel(%arg0: i32, %arg1: memref<1x1xf32, #tpu.memory_space<smem>>, %arg2: memref<8x256xf32, #tpu.memory_space<vmem>>, %arg3: memref<8x1xf32, #tpu.memory_space<vmem>>, %arg4: memref<8x256xf32, #tpu.memory_space<vmem>>) attributes {dimension_semantics = [#tpu.dimension_semantics<parallel>], iteration_bounds = array<i64: 1>, scalar_prefetch = 0 : i64, scratch_operands = 0 : i64, tpu.core_type = #tpu.core_type<tc>, window_params = [{transform_indices = @transform_0, window_bounds = array<i64: 1, 1>}, {transform_indices = @transform_1, window_bounds = array<i64: 8, 256>}, {transform_indices = @transform_2, window_bounds = array<i64: 8, 1>}, {transform_indices = @transform_3, window_bounds = array<i64: 8, 256>}]} {
    %c0 = arith.constant 0 : index
    %c0_0 = arith.constant 0 : index
    %0 = memref.load %arg1[%c0, %c0_0] : memref<1x1xf32, #tpu.memory_space<smem>>
    %c0_1 = arith.constant 0 : index
    %c0_2 = arith.constant 0 : index
    %1 = vector.load %arg2[%c0_1, %c0_2] : memref<8x256xf32, #tpu.memory_space<vmem>>, vector<8x256xf32>
    %c0_3 = arith.constant 0 : index
    %c0_4 = arith.constant 0 : index
    %2 = vector.load %arg3[%c0_3, %c0_4] : memref<8x1xf32, #tpu.memory_space<vmem>>, vector<8x1xf32>
    %3 = vector.broadcast %2 : vector<8x1xf32> to vector<8x256xf32>
    %4 = arith.cmpf ogt, %1, %3 : vector<8x256xf32>
    %5 = vector.broadcast %0 : f32 to vector<8x256xf32>
    %6 = arith.select %4, %5, %1 : vector<8x256xi1>, vector<8x256xf32>
    %cst = arith.constant 0.000000e+00 : f32
    %7 = vector.broadcast %cst : f32 to vector<8x256xf32>
    %8 = arith.maximumf %6, %7 : vector<8x256xf32>
    %c0_5 = arith.constant 0 : index
    %c0_6 = arith.constant 0 : index
    %9 = vector.load %arg4[%c0_5, %c0_6] : memref<8x256xf32, #tpu.memory_space<vmem>>, vector<8x256xf32>
    tpu.vector_store %arg4[%c0_5, %c0_6], %8 {strides = array<i32>} : memref<8x256xf32, #tpu.memory_space<vmem>>, vector<8x256xf32>,
    return
  }
  func.func @transform_0(%arg0: i32) -> (i32, i32) {
    %c0_i32 = arith.constant 0 : i32
    %c0_i32_0 = arith.constant 0 : i32
    %c0_i32_1 = arith.constant 0 : i32
    return %c0_i32, %c0_i32_0 : i32, i32
  }
  func.func @transform_1(%arg0: i32) -> (i32, i32) {
    %c0_i32 = arith.constant 0 : i32
    %c0_i32_0 = arith.constant 0 : i32
    return %arg0, %c0_i32 : i32, i32
  }
  func.func @transform_2(%arg0: i32) -> (i32, i32) {
    %c0_i32 = arith.constant 0 : i32
    %c0_i32_0 = arith.constant 0 : i32
    return %arg0, %c0_i32 : i32, i32
  }
  func.func @transform_3(%arg0: i32) -> (i32, i32) {
    %c0_i32 = arith.constant 0 : i32
    %c0_i32_0 = arith.constant 0 : i32
    return %arg0, %c0_i32 : i32, i32
  }
}

</mosaic_0001>

<llo_original>
// kernel: tpu_custom_call.1
$region0: #{tpu_custom_call.1}
  #allocation0 [shape = 'u32[]', space=smem, size = 0x4, offset = 0x4, fixed_abs, tag = 'smem constant byte address 0x4 - core index']
  #allocation1 [shape = 'u32[72,128]{1,0:T(1,128)}', space=vmem, size = 0x9000, scoped, tag = 'internal scratch']
  #allocation2 [shape = 'f32[1,1]{1,0:T(1,128)S(6)}', space=smem, size = 0x200, scoped, tag = 'scoped memory for tpu_custom_call.1']
  %s0 = inlined_call_operand.<no memory space> [shape: f32[1,1], index: 0, kind: input, shape index: {}]
  %s1 = inlined_call_operand.hbm [shape: f32[8,256], index: 1, kind: input, shape index: {}]
  %s2 = inlined_call_operand.vmem [shape: f32[8,1], index: 2, kind: input, shape index: {}]
  %s3 = inlined_call_operand.hbm [shape: f32[8,256], index: 3, kind: output, shape index: {}]
  %s4 = sld [smem:[#allocation0]]
  $region26: #{tpu_custom_call.1} parent=0
    _
  %s6 = ssub.s32 1, %s4
  %s7 = scalar_select 0, %s6, %s4
  %8 = sst [smem:[#allocation2]] %s0
  $region1: #{tpu_custom_call.1} parent=0
    #allocation3 [shape = 'u8[8192]{0}', space=vmem, size = 0x2000, scoped, tag = 'input window, operand 1, single buffered']
    #allocation4 [shape = 's32[1]{0}', space=sflag, size = 0x4, scoped, tag = 'scoped memory for tpu_custom_call.1']
    #allocation5 [shape = 's32[1]{0}', space=sflag, size = 0x4, scoped, tag = 'scoped memory for tpu_custom_call.1']
    #allocation6 [shape = 'u8[8192]{0}', space=vmem, size = 0x2000, scoped, tag = 'output window, operand 0, single buffered']
    %9 = vsyncpa [#allocation4], 0
    %10 = vsyncpa [#allocation5], 0
    // Predicated region
    $region2: #{tpu_custom_call.1} parent=1 // pred_check
      _
    $region3: #{tpu_custom_call.1} parent=1 // pred_check_branch
      %12 = sbr.rel (0) target = $region5
    $region4: #{tpu_custom_call.1} parent=1 // pred_region
      _
    $region5: #{tpu_custom_call.1} parent=1 // pred_fallthru
      _
    // Predicated region
    $region6: #{tpu_custom_call.1} parent=1 // pred_check
      _
    $region7: #{tpu_custom_call.1} parent=1 // pred_check_branch
      %14 = sbr.rel (0) target = $region9
    $region8: #{tpu_custom_call.1} parent=1 // pred_region
      %16 = vsyncadd [#allocation4], 0
      %s18 = sshll.u32 %s1, 4
      %s19 = int_to_ptr.hbm [resolvable:$true] %s18
      %s20 = sshll.u32 [#allocation3], 4
      %s21 = int_to_ptr.vmem [resolvable:$true] %s20
      %23 = dma.hbm_to_vmem [thread:$0]  %s19, 256, %s21, [#allocation4]
    $region9: #{tpu_custom_call.1} parent=1 // pred_fallthru
      _
    // Predicated region
    $region10: #{tpu_custom_call.1} parent=1 // pred_check
      _
    $region11: #{tpu_custom_call.1} parent=1 // pred_check_branch
      %25 = sbr.rel (0) target = $region13
    $region12: #{tpu_custom_call.1} parent=1 // pred_region
      _
    $region13: #{tpu_custom_call.1} parent=1 // pred_fallthru
      _
    // Predicated region
    $region14: #{tpu_custom_call.1} parent=1 // pred_check
      _
    $region15: #{tpu_custom_call.1} parent=1 // pred_check_branch
      %27 = sbr.rel (0) target = $region17
    $region16: #{tpu_custom_call.1} parent=1 // pred_region
      %29 = dma.done [#allocation4], 256
    $region17: #{tpu_custom_call.1} parent=1 // pred_fallthru
      _
    %s30 = sld [smem:[#allocation2]]
    %v31 = vld [vmem:[#allocation3] sm:$0xff]
    %v32 = vld [vmem:[#allocation3 + $0x8] sm:$0xff]
    %v33 = vld [vmem:[%s2] sm:$0xff]
    %35 = vset.pattern.permute.xlu0 0
    %36 = vperm.xlu0 %35, %v33
    %v37 = vpop.permute.xlu0 %36
    %vm39 = vcmp.gt.f32.partialorder %v31, %v37
    %vm40 = vcmp.gt.f32.partialorder %v32, %v37
    %v41 = vstv %s30
    %v42 = vsel %vm39, %v41, %v31
    %v43 = vsel %vm40, %v41, %v32
    %v44 = vmax.f32 %v42, 0.0
    %v45 = vmax.f32 %v43, 0.0
    %46 = vst [vmem:[#allocation6] sm:$0xff] %v44
    %47 = vst [vmem:[#allocation6 + $0x8] sm:$0xff] %v45
    // Predicated region
    $region18: #{tpu_custom_call.1} parent=1 // pred_check
      _
    $region19: #{tpu_custom_call.1} parent=1 // pred_check_branch
      %49 = sbr.rel (0) target = $region21
    $region20: #{tpu_custom_call.1} parent=1 // pred_region
      %51 = vsyncadd [#allocation5], 0
      %s53 = sshll.u32 [#allocation6], 4
      %s54 = int_to_ptr.vmem [resolvable:$true] %s53
      %s55 = sshll.u32 %s3, 4
      %s56 = int_to_ptr.hbm [resolvable:$true] %s55
      %58 = dma.vmem_to_hbm [thread:$0]  %s54, 256, %s56, [#allocation5]
    $region21: #{tpu_custom_call.1} parent=1 // pred_fallthru
      _
    // Predicated region
    $region22: #{tpu_custom_call.1} parent=1 // pred_check
      _
    $region23: #{tpu_custom_call.1} parent=1 // pred_check_branch
      %60 = sbr.rel (0) target = $region25
    $region24: #{tpu_custom_call.1} parent=1 // pred_region
      %62 = dma.done [#allocation5], 256
    $region25: #{tpu_custom_call.1} parent=1 // pred_fallthru
      _
    %63 = vsyncpa [#allocation4], 1
    %64 = vsyncpa [#allocation5], 1

</llo_original>
